<compile_context>
chip_gen: v5e
topology: v5e:2x2
jax: 0.10.0
libtpu: 0.0.40
codegen_flags: <defaults>
</compile_context>

<pallas_src>
import functools
import math

import jax
import jax.numpy as jnp
import numpy as np
from jax.experimental import pallas as pl
from jax.experimental.pallas import tpu as pltpu


# ----------------------------- helpers --------------------------------------

def _round_up(x, m):
    return (x + m - 1) // m * m


def _pick_tile(total, max_tile, unit):
    """Largest multiple of `unit` that divides `total` and is <= max_tile."""
    best = unit
    t = unit
    limit = min(total, max_tile)
    while t <= limit:
        if total % t == 0:
            best = t
        t += unit
    return best


def _gelu_tanh(x):
    # GELU(approximate='tanh'), computed in f32 on the VPU/EUP.
    c = math.sqrt(2.0 / math.pi)
    return 0.5 * x * (1.0 + jnp.tanh(c * (x + 0.044715 * x * x * x)))


def _vmem_budget_bytes():
    """Per-core VMEM budget with headroom (v7x: 64 MiB/TC, v5e/v6e: 128 MiB)."""
    cap = None
    try:
        info = pltpu.get_tpu_info()
        cap = getattr(info, "vmem_capacity_bytes", None)
    except Exception:
        cap = None
    if not cap:
        cap = 64 << 20              # conservative default (v7x per-TensorCore)
    return int(cap) - (8 << 20)     # leave headroom for compiler scratch


# ----------------------------- kernels ----------------------------------------

def ffn_resident_kernel(x_ref, w_fc_ref, b_fc_ref, w_pr_ref, b_pr_ref, o_ref,
                        acc_ref, *, th, n_chunks):
    """Weights fully resident in VMEM; loop over hidden chunks of width `th`."""
    acc_ref[...] = jnp.zeros_like(acc_ref)
    x = x_ref[...]                              # (TM, C_pad), loaded once
    for t in range(n_chunks):                   # static unroll; chunks use static ref slices
        lo, hi = t * th, (t + 1) * th
        f = jnp.dot(x, w_fc_ref[:, lo:hi], preferred_element_type=jnp.float32)
        f = _gelu_tanh(f + b_fc_ref[:, lo:hi])  # bias + GELU in f32
        acc_ref[...] += jnp.dot(f.astype(w_pr_ref.dtype), w_pr_ref[lo:hi, :],
                                preferred_element_type=jnp.float32)
    o_ref[...] = (acc_ref[...] + b_pr_ref[...]).astype(o_ref.dtype)


def ffn_streaming_kernel(x_ref, w_fc_ref, b_fc_ref, w_pr_ref, b_pr_ref, o_ref, acc_ref):
    """K-tiled reduction over the hidden dim (grid axis 1, 'arbitrary')."""
    h = pl.program_id(1)

    @pl.when(h == 0)
    def _():
        acc_ref[...] = jnp.zeros_like(acc_ref)

    f = jnp.dot(x_ref[...], w_fc_ref[...], preferred_element_type=jnp.float32)
    f = _gelu_tanh(f + b_fc_ref[...])
    acc_ref[...] += jnp.dot(f.astype(w_pr_ref.dtype), w_pr_ref[...],
                            preferred_element_type=jnp.float32)

    @pl.when(h == pl.num_programs(1) - 1)
    def _():
        o_ref[...] = (acc_ref[...] + b_pr_ref[...]).astype(o_ref.dtype)


# ----------------------------- param preparation -------------------------------

def prepare_ffn_params(params, compute_dtype=jnp.bfloat16):
    """Pad (if needed) and cast weights once, outside the per-call hot path."""
    w_fc, b_fc = params["w_fc"], params["b_fc"]
    w_pr, b_pr = params["w_pr"], params["b_pr"]
    C, H = w_fc.shape
    C_pad, H_pad = _round_up(C, 128), _round_up(H, 128)

    def pad2(a, rows, cols):
        if a.shape == (rows, cols):
            return a
        return jnp.pad(a, ((0, rows - a.shape[0]), (0, cols - a.shape[1])))

    return {
        "w_fc": pad2(w_fc, C_pad, H_pad).astype(compute_dtype),
        "b_fc": pad2(b_fc.reshape(1, H), 1, H_pad).astype(jnp.float32),
        "w_pr": pad2(w_pr, H_pad, C_pad).astype(compute_dtype),
        "b_pr": pad2(b_pr.reshape(1, C), 1, C_pad).astype(jnp.float32),
        "C": C, "H": H, "C_pad": C_pad, "H_pad": H_pad,
        "compute_dtype": compute_dtype,
    }


# ----------------------------- wrapper ----------------------------------------

def ffn_block(x, prepared, *, tm_max=512, th_max=1024, weights_resident=None):
    compute_dtype = prepared["compute_dtype"]
    C, C_pad, H_pad = prepared["C"], prepared["C_pad"], prepared["H_pad"]

    orig_shape = x.shape
    assert orig_shape[-1] == C
    x2 = x.reshape(-1, C)
    M = x2.shape[0]
    out_dtype = x.dtype

    cb = jnp.dtype(compute_dtype).itemsize
    ob = jnp.dtype(out_dtype).itemsize
    budget = _vmem_budget_bytes()

    # ---- row tiling: big tiles for weight reuse, but >=2 tiles when M is large so the
    # "parallel" row axis can shard across v7x's two TensorCores; minimize ragged padding.
    M8 = _round_up(M, 8)
    n_rows = max(1, -(-M8 // tm_max))
    if n_rows == 1 and M8 > 256:
        n_rows = 2
    TM = _round_up(-(-M8 // n_rows), 8)
    M_pad = n_rows * TM

    # ---- residency decision (weights counted double-buffered to stay conservative).
    res_est = (2 * TM * C_pad * (cb + ob)
               + 2 * (C_pad * H_pad + H_pad * C_pad) * cb
               + (H_pad + C_pad) * 4
               + TM * C_pad * 4)
    if weights_resident is None:
        weights_resident = res_est <= budget

    if weights_resident:
        TH = _pick_tile(H_pad, th_max, 128)
        n_chunks = H_pad // TH
        kernel = functools.partial(ffn_resident_kernel, th=TH, n_chunks=n_chunks)
        grid = (M_pad // TM,)
        in_specs = [
            pl.BlockSpec((TM, C_pad),    lambda i: (i, 0)),   # activations
            pl.BlockSpec((C_pad, H_pad), lambda i: (0, 0)),   # c_fc weight (resident)
            pl.BlockSpec((1, H_pad),     lambda i: (0, 0)),   # c_fc bias
            pl.BlockSpec((H_pad, C_pad), lambda i: (0, 0)),   # c_proj weight (resident)
            pl.BlockSpec((1, C_pad),     lambda i: (0, 0)),   # c_proj bias
        ]
        out_specs = pl.BlockSpec((TM, C_pad), lambda i: (i, 0))
        dims = ("parallel",)
        est = res_est
    else:
        TH = _pick_tile(H_pad, th_max, 128)

        def est_fn(tm, th):
            return (2 * (tm * C_pad * cb + C_pad * th * cb + th * 4
                         + th * C_pad * cb + C_pad * 4 + tm * C_pad * ob)
                    + tm * C_pad * 4)

        # Shrink tiles (hidden first, then rows) until the double-buffered footprint fits.
        while est_fn(TM, TH) > budget:
            if TH > 128:
                TH = _pick_tile(H_pad, TH - 128, 128)
            elif TM > 8:
                n_rows *= 2
                TM = _round_up(-(-M8 // n_rows), 8)
                M_pad = n_rows * TM
            else:
                break

        kernel = ffn_streaming_kernel
        grid = (M_pad // TM, H_pad // TH)
        in_specs = [
            pl.BlockSpec((TM, C_pad), lambda i, h: (i, 0)),   # activations
            pl.BlockSpec((C_pad, TH), lambda i, h: (0, h)),   # c_fc weight, K-tiled
            pl.BlockSpec((1, TH),     lambda i, h: (0, h)),   # c_fc bias tile
            pl.BlockSpec((TH, C_pad), lambda i, h: (h, 0)),   # c_proj weight, K-tiled
            pl.BlockSpec((1, C_pad),  lambda i, h: (0, 0)),   # c_proj bias
        ]
        out_specs = pl.BlockSpec((TM, C_pad), lambda i, h: (i, 0))
        dims = ("parallel", "arbitrary")
        est = est_fn(TM, TH)

    # ---- pad + cast activations at the boundary (weights already prepared once).
    x_p = x2 if x2.shape == (M_pad, C_pad) else jnp.pad(x2, ((0, M_pad - M), (0, C_pad - C)))
    x_p = x_p.astype(compute_dtype)

    vmem_limit = int(min(128 << 20, max(est + (4 << 20), 32 << 20)))

    out = pl.pallas_call(
        kernel,
        out_shape=jax.ShapeDtypeStruct((M_pad, C_pad), out_dtype),
        grid=grid,
        in_specs=in_specs,
        out_specs=out_specs,
        scratch_shapes=[pltpu.VMEM((TM, C_pad), jnp.float32)],
        compiler_params=pltpu.CompilerParams(
            dimension_semantics=dims,
            vmem_limit_bytes=vmem_limit,
        ),
    )(x_p, prepared["w_fc"], prepared["b_fc"], prepared["w_pr"], prepared["b_pr"])

    return out[:M, :C].reshape(orig_shape)


# ----------------------------- reference (plain JAX) --------------------------

def ffn_ref(x, params):
    f = x @ params["w_fc"] + params["b_fc"]
    f = _gelu_tanh(f)
    return f @ params["w_pr"] + params["b_pr"]


# --------------------------------- main ---------------------------------------

if __name__ == "__main__":
    B, T, C = 2, 8, 32          # batch, seq, n_embed  (hidden = 4*C = 128)
    H = 4 * C

    key = jax.random.PRNGKey(0)
    k0, k1, k2, k3, k4 = jax.random.split(key, 5)

    params = {
        "w_fc": 0.02 * jax.random.normal(k0, (C, H), jnp.float32),
        "b_fc": 0.02 * jax.random.normal(k1, (H,), jnp.float32),
        "w_pr": 0.02 * jax.random.normal(k2, (H, C), jnp.float32),
        "b_pr": 0.02 * jax.random.normal(k3, (C,), jnp.float32),
    }
    x = jax.random.normal(k4, (B, T, C), jnp.float32)

    ref = jax.block_until_ready(ffn_ref(x, params))

    # Default path: bf16 MXU operands, f32 accumulation, weights resident in VMEM.
    p_bf16 = prepare_ffn_params(params, jnp.bfloat16)
    out_bf16 = jax.block_until_ready(ffn_block(x, p_bf16))
    np.testing.assert_allclose(np.asarray(out_bf16), np.asarray(ref), rtol=2e-2, atol=2e-2)

    # f32 MXU operands: tight tolerance.
    p_f32 = prepare_ffn_params(params, jnp.float32)
    out_f32 = jax.block_until_ready(ffn_block(x, p_f32))
    np.testing.assert_allclose(np.asarray(out_f32), np.asarray(ref), rtol=1e-4, atol=1e-5)

    # Streaming (K-tiled) fallback path, exercised explicitly for coverage.
    out_stream = jax.block_until_ready(ffn_block(x, p_bf16, weights_resident=False))
    np.testing.assert_allclose(np.asarray(out_stream), np.asarray(ref), rtol=2e-2, atol=2e-2)

    print("KERNEL_OK")
</pallas_src>

<mosaic_0001>
module attributes {stable_mosaic.version = 11 : i64} {
  func.func @ffn_resident_kernel(%arg0: i32, %arg1: memref<16x128xbf16, #tpu.memory_space<vmem>>, %arg2: memref<128x128xbf16, #tpu.memory_space<vmem>>, %arg3: memref<1x128xf32, #tpu.memory_space<vmem>>, %arg4: memref<128x128xbf16, #tpu.memory_space<vmem>>, %arg5: memref<1x128xf32, #tpu.memory_space<vmem>>, %arg6: memref<16x128xf32, #tpu.memory_space<vmem>>, %arg7: memref<16x128xf32, #tpu.memory_space<vmem>>) attributes {dimension_semantics = [#tpu.dimension_semantics<parallel>], iteration_bounds = array<i64: 1>, scalar_prefetch = 0 : i64, scratch_operands = 1 : i64, tpu.core_type = #tpu.core_type<tc>, window_params = [{transform_indices = @transform_0, window_bounds = array<i64: 16, 128>}, {pipeline_mode = #tpu.pipeline_mode<synchronous>, transform_indices = @transform_1, window_bounds = array<i64: 128, 128>}, {pipeline_mode = #tpu.pipeline_mode<synchronous>, transform_indices = @transform_2, window_bounds = array<i64: 1, 128>}, {pipeline_mode = #tpu.pipeline_mode<synchronous>, transform_indices = @transform_3, window_bounds = array<i64: 128, 128>}, {pipeline_mode = #tpu.pipeline_mode<synchronous>, transform_indices = @transform_4, window_bounds = array<i64: 1, 128>}, {transform_indices = @transform_5, window_bounds = array<i64: 16, 128>}]} {
    %cst = arith.constant 0.000000e+00 : f32
    %0 = vector.broadcast %cst : f32 to vector<16x128xf32>
    %c0 = arith.constant 0 : index
    %c0_0 = arith.constant 0 : index
    %1 = vector.load %arg7[%c0, %c0_0] : memref<16x128xf32, #tpu.memory_space<vmem>>, vector<16x128xf32>
    tpu.vector_store %arg7[%c0, %c0_0], %0 {strides = array<i32>} : memref<16x128xf32, #tpu.memory_space<vmem>>, vector<16x128xf32>,
    %c0_1 = arith.constant 0 : index
    %c0_2 = arith.constant 0 : index
    %2 = vector.load %arg1[%c0_1, %c0_2] : memref<16x128xbf16, #tpu.memory_space<vmem>>, vector<16x128xbf16>
    %c0_3 = arith.constant 0 : index
    %c0_4 = arith.constant 0 : index
    %3 = vector.load %arg2[%c0_3, %c0_4] : memref<128x128xbf16, #tpu.memory_space<vmem>>, vector<128x128xbf16>
    %cst_5 = arith.constant dense<0.000000e+00> : vector<16x128xf32>
    %4 = tpu.matmul %2, %3, %cst_5 {dimension_numbers = #tpu.dot_dimension_numbers<[1], [0], [0], [1], [0, 0, 1, 1], [], []>} : vector<16x128xbf16>, vector<128x128xbf16>, vector<16x128xf32> -> vector<16x128xf32>
    %c0_6 = arith.constant 0 : index
    %c0_7 = arith.constant 0 : index
    %5 = vector.load %arg3[%c0_6, %c0_7] : memref<1x128xf32, #tpu.memory_space<vmem>>, vector<1x128xf32>
    %6 = vector.broadcast %5 : vector<1x128xf32> to vector<16x128xf32>
    %7 = arith.addf %4, %6 : vector<16x128xf32>
    %cst_8 = arith.constant 5.000000e-01 : f32
    %8 = vector.broadcast %cst_8 : f32 to vector<16x128xf32>
    %9 = arith.mulf %8, %7 : vector<16x128xf32>
    %cst_9 = arith.constant 4.471500e-02 : f32
    %10 = vector.broadcast %cst_9 : f32 to vector<16x128xf32>
    %11 = arith.mulf %10, %7 : vector<16x128xf32>
    %12 = arith.mulf %11, %7 : vector<16x128xf32>
    %13 = arith.mulf %12, %7 : vector<16x128xf32>
    %14 = arith.addf %7, %13 : vector<16x128xf32>
    %cst_10 = arith.constant 0.797884583 : f32
    %15 = vector.broadcast %cst_10 : f32 to vector<16x128xf32>
    %16 = arith.mulf %15, %14 : vector<16x128xf32>
    %17 = math.tanh %16 : vector<16x128xf32>
    %cst_11 = arith.constant 1.000000e+00 : f32
    %18 = vector.broadcast %cst_11 : f32 to vector<16x128xf32>
    %19 = arith.addf %18, %17 : vector<16x128xf32>
    %20 = arith.mulf %9, %19 : vector<16x128xf32>
    %c0_12 = arith.constant 0 : index
    %c0_13 = arith.constant 0 : index
    %21 = vector.load %arg7[%c0_12, %c0_13] : memref<16x128xf32, #tpu.memory_space<vmem>>, vector<16x128xf32>
    %22 = arith.truncf %20 : vector<16x128xf32> to vector<16x128xbf16>
    %c0_14 = arith.constant 0 : index
    %c0_15 = arith.constant 0 : index
    %23 = vector.load %arg4[%c0_14, %c0_15] : memref<128x128xbf16, #tpu.memory_space<vmem>>, vector<128x128xbf16>
    %cst_16 = arith.constant dense<0.000000e+00> : vector<16x128xf32>
    %24 = tpu.matmul %22, %23, %cst_16 {dimension_numbers = #tpu.dot_dimension_numbers<[1], [0], [0], [1], [0, 0, 1, 1], [], []>} : vector<16x128xbf16>, vector<128x128xbf16>, vector<16x128xf32> -> vector<16x128xf32>
    %25 = arith.addf %21, %24 : vector<16x128xf32>
    %c0_17 = arith.constant 0 : index
    %c0_18 = arith.constant 0 : index
    %26 = vector.load %arg7[%c0_17, %c0_18] : memref<16x128xf32, #tpu.memory_space<vmem>>, vector<16x128xf32>
    tpu.vector_store %arg7[%c0_17, %c0_18], %25 {strides = array<i32>} : memref<16x128xf32, #tpu.memory_space<vmem>>, vector<16x128xf32>,
    %c0_19 = arith.constant 0 : index
    %c0_20 = arith.constant 0 : index
    %27 = vector.load %arg7[%c0_19, %c0_20] : memref<16x128xf32, #tpu.memory_space<vmem>>, vector<16x128xf32>
    %c0_21 = arith.constant 0 : index
    %c0_22 = arith.constant 0 : index
    %28 = vector.load %arg5[%c0_21, %c0_22] : memref<1x128xf32, #tpu.memory_space<vmem>>, vector<1x128xf32>
    %29 = vector.broadcast %28 : vector<1x128xf32> to vector<16x128xf32>
    %30 = arith.addf %27, %29 : vector<16x128xf32>
    %c0_23 = arith.constant 0 : index
    %c0_24 = arith.constant 0 : index
    %31 = vector.load %arg6[%c0_23, %c0_24] : memref<16x128xf32, #tpu.memory_space<vmem>>, vector<16x128xf32>
    tpu.vector_store %arg6[%c0_23, %c0_24], %30 {strides = array<i32>} : memref<16x128xf32, #tpu.memory_space<vmem>>, vector<16x128xf32>,
    return
  }
  func.func @transform_0(%arg0: i32) -> (i32, i32) {
    %c0_i32 = arith.constant 0 : i32
    %c0_i32_0 = arith.constant 0 : i32
    return %arg0, %c0_i32 : i32, i32
  }
  func.func @transform_1(%arg0: i32) -> (i32, i32) {
    %c0_i32 = arith.constant 0 : i32
    %c0_i32_0 = arith.constant 0 : i32
    %c0_i32_1 = arith.constant 0 : i32
    return %c0_i32, %c0_i32_0 : i32, i32
  }
  func.func @transform_2(%arg0: i32) -> (i32, i32) {
    %c0_i32 = arith.constant 0 : i32
    %c0_i32_0 = arith.constant 0 : i32
    %c0_i32_1 = arith.constant 0 : i32
    return %c0_i32, %c0_i32_0 : i32, i32
  }
  func.func @transform_3(%arg0: i32) -> (i32, i32) {
    %c0_i32 = arith.constant 0 : i32
    %c0_i32_0 = arith.constant 0 : i32
    %c0_i32_1 = arith.constant 0 : i32
    return %c0_i32, %c0_i32_0 : i32, i32
  }
  func.func @transform_4(%arg0: i32) -> (i32, i32) {
    %c0_i32 = arith.constant 0 : i32
    %c0_i32_0 = arith.constant 0 : i32
    %c0_i32_1 = arith.constant 0 : i32
    return %c0_i32, %c0_i32_0 : i32, i32
  }
  func.func @transform_5(%arg0: i32) -> (i32, i32) {
    %c0_i32 = arith.constant 0 : i32
    %c0_i32_0 = arith.constant 0 : i32
    return %arg0, %c0_i32 : i32, i32
  }
}

</mosaic_0001>

<llo_original>
// kernel: tpu_custom_call.1
$region0: #{tpu_custom_call.1}
  #allocation0 [shape = 'u32[]', space=smem, size = 0x4, offset = 0x4, fixed_abs, tag = 'smem constant byte address 0x4 - core index']
  #allocation1 [shape = 'u32[72,128]{1,0:T(1,128)}', space=vmem, size = 0x9000, scoped, tag = 'internal scratch']
  #allocation2 [shape = 'f32[16,128]{1,0:T(8,128)}', space=vmem, size = 0x2000, scoped, tag = 'scratch operand']
  %s0 = inlined_call_operand.hbm [shape: bf16[16,128], index: 0, kind: input, shape index: {}]
  %s1 = inlined_call_operand.hbm [shape: bf16[128,128], index: 1, kind: input, shape index: {}]
  %s2 = inlined_call_operand.vmem [shape: f32[1,128], index: 2, kind: input, shape index: {}]
  %s3 = inlined_call_operand.hbm [shape: bf16[128,128], index: 3, kind: input, shape index: {}]
  %s4 = inlined_call_operand.vmem [shape: f32[1,128], index: 4, kind: input, shape index: {}]
  %s5 = inlined_call_operand.hbm [shape: f32[16,128], index: 5, kind: output, shape index: {}]
  %s6 = sld [smem:[#allocation0]]
  $region42: #{tpu_custom_call.1} parent=0
    _
  %s8 = ssub.s32 1, %s6
  %s9 = scalar_select 0, %s8, %s6
  $region1: #{tpu_custom_call.1} parent=0
    #allocation3 [shape = 'u8[4096]{0}', space=vmem, size = 0x1000, scoped, tag = 'input window, operand 0, single buffered']
    #allocation4 [shape = 's32[1]{0}', space=sflag, size = 0x4, scoped, tag = 'scoped memory for tpu_custom_call.1']
    #allocation5 [shape = 's32[1]{0}', space=sflag, size = 0x4, scoped, tag = 'scoped memory for tpu_custom_call.1']
    #allocation6 [shape = 'u8[32768]{0}', space=vmem, size = 0x8000, scoped, tag = 'input window, operand 1, single buffered']
    #allocation7 [shape = 's32[1]{0}', space=sflag, size = 0x4, scoped, tag = 'scoped memory for tpu_custom_call.1']
    #allocation8 [shape = 'u8[32768]{0}', space=vmem, size = 0x8000, scoped, tag = 'input window, operand 3, single buffered']
    #allocation9 [shape = 'u8[8192]{0}', space=vmem, size = 0x2000, scoped, tag = 'output window, operand 0, single buffered']
    %10 = vsyncpa [#allocation4], 0
    %11 = vsyncpa [#allocation7], 0
    %12 = vsyncpa [#allocation5], 0
    // Predicated region
    $region2: #{tpu_custom_call.1} parent=1 // pred_check
      _
    $region3: #{tpu_custom_call.1} parent=1 // pred_check_branch
      %14 = sbr.rel (0) target = $region5
    $region4: #{tpu_custom_call.1} parent=1 // pred_region
      %16 = vsyncadd [#allocation4], 0
      %s17 = sshll.u32 %s0, 4
      %s18 = int_to_ptr.hbm [resolvable:$true] %s17
      %s19 = sshll.u32 [#allocation3], 4
      %s20 = int_to_ptr.vmem [resolvable:$true] %s19
      %25 = dma.hbm_to_vmem [thread:$0]  %s18, 128, %s20, [#allocation4], 64, 64, 4
    $region5: #{tpu_custom_call.1} parent=1 // pred_fallthru
      _
    // Predicated region
    $region6: #{tpu_custom_call.1} parent=1 // pred_check
      _
    $region7: #{tpu_custom_call.1} parent=1 // pred_check_branch
      %27 = sbr.rel (0) target = $region9
    $region8: #{tpu_custom_call.1} parent=1 // pred_region
      %29 = vsyncadd [#allocation7], 0
      %s30 = sshll.u32 %s1, 4
      %s31 = int_to_ptr.hbm [resolvable:$true] %s30
      %s32 = sshll.u32 [#allocation6], 4
      %s33 = int_to_ptr.vmem [resolvable:$true] %s32
      %38 = dma.hbm_to_vmem [thread:$0]  %s31, 1024, %s33, [#allocation7], 64, 64, 4
    $region9: #{tpu_custom_call.1} parent=1 // pred_fallthru
      _
    // Predicated region
    $region10: #{tpu_custom_call.1} parent=1 // pred_check
      _
    $region11: #{tpu_custom_call.1} parent=1 // pred_check_branch
      %40 = sbr.rel (0) target = $region13
    $region12: #{tpu_custom_call.1} parent=1 // pred_region
      _
    $region13: #{tpu_custom_call.1} parent=1 // pred_fallthru
      _
    // Predicated region
    $region14: #{tpu_custom_call.1} parent=1 // pred_check
      _
    $region15: #{tpu_custom_call.1} parent=1 // pred_check_branch
      %42 = sbr.rel (0) target = $region17
    $region16: #{tpu_custom_call.1} parent=1 // pred_region
      %44 = vsyncadd [#allocation7], 0
      %s45 = sshll.u32 %s3, 4
      %s46 = int_to_ptr.hbm [resolvable:$true] %s45
      %s47 = sshll.u32 [#allocation8], 4
      %s48 = int_to_ptr.vmem [resolvable:$true] %s47
      %53 = dma.hbm_to_vmem [thread:$0]  %s46, 1024, %s48, [#allocation7], 64, 64, 4
    $region17: #{tpu_custom_call.1} parent=1 // pred_fallthru
      _
    // Predicated region
    $region18: #{tpu_custom_call.1} parent=1 // pred_check
      _
    $region19: #{tpu_custom_call.1} parent=1 // pred_check_branch
      %55 = sbr.rel (0) target = $region21
    $region20: #{tpu_custom_call.1} parent=1 // pred_region
      _
    $region21: #{tpu_custom_call.1} parent=1 // pred_fallthru
      _
    // Predicated region
    $region22: #{tpu_custom_call.1} parent=1 // pred_check
      _
    $region23: #{tpu_custom_call.1} parent=1 // pred_check_branch
      %57 = sbr.rel (0) target = $region25
    $region24: #{tpu_custom_call.1} parent=1 // pred_region
      %59 = dma.done [#allocation4], 128
    $region25: #{tpu_custom_call.1} parent=1 // pred_fallthru
      _
    // Predicated region
    $region26: #{tpu_custom_call.1} parent=1 // pred_check
      _
    $region27: #{tpu_custom_call.1} parent=1 // pred_check_branch
      %61 = sbr.rel (0) target = $region29
    $region28: #{tpu_custom_call.1} parent=1 // pred_region
      %63 = dma.done [#allocation7], 1024
    $region29: #{tpu_custom_call.1} parent=1 // pred_fallthru
      _
    // Predicated region
    $region30: #{tpu_custom_call.1} parent=1 // pred_check
      _
    $region31: #{tpu_custom_call.1} parent=1 // pred_check_branch
      %65 = sbr.rel (0) target = $region33
    $region32: #{tpu_custom_call.1} parent=1 // pred_region
      %67 = dma.done [#allocation7], 1024
    $region33: #{tpu_custom_call.1} parent=1 // pred_fallthru
      _
    %68 = vst [vmem:[#allocation2] sm:$0xff] 0.0
    %69 = vst [vmem:[#allocation2 + $0x8] sm:$0xff] 0.0
    %v70 = vld [vmem:[#allocation3] sm:$0xf]
    %v71 = vld [vmem:[#allocation3 + $0x4] sm:$0xf]
    %v72 = vld [vmem:[#allocation6] sm:$0xf]
    %v73 = vld [vmem:[#allocation6 + $0x4] sm:$0xf]
    %v74 = vld [vmem:[#allocation6 + $0x8] sm:$0xf]
    %v75 = vld [vmem:[#allocation6 + $0xc] sm:$0xf]
    %v76 = vld [vmem:[#allocation6 + $0x10] sm:$0xf]
    %v77 = vld [vmem:[#allocation6 + $0x14] sm:$0xf]
    %v78 = vld [vmem:[#allocation6 + $0x18] sm:$0xf]
    %v79 = vld [vmem:[#allocation6 + $0x1c] sm:$0xf]
    %v80 = vld [vmem:[#allocation6 + $0x20] sm:$0xf]
    %v81 = vld [vmem:[#allocation6 + $0x24] sm:$0xf]
    %v82 = vld [vmem:[#allocation6 + $0x28] sm:$0xf]
    %v83 = vld [vmem:[#allocation6 + $0x2c] sm:$0xf]
    %v84 = vld [vmem:[#allocation6 + $0x30] sm:$0xf]
    %v85 = vld [vmem:[#allocation6 + $0x34] sm:$0xf]
    %v86 = vld [vmem:[#allocation6 + $0x38] sm:$0xf]
    %v87 = vld [vmem:[#allocation6 + $0x3c] sm:$0xf]
    %v88 = vld [vmem:[%s2] sm:$0x1]
    %v90 = vperm.slane %v88, 0
    %v94 = vunpack.c.l.b16 %v70
    %v95 = vunpack.c.l.b16 %v71
    %v96 = vpack.c.b16 %v95, %v94
    %v114 = vunpack.c.l.b16 %v72
    %v115 = vunpack.c.l.b16 %v73
    %v116 = vunpack.c.l.b16 %v74
    %v117 = vunpack.c.l.b16 %v75
    %v118 = vunpack.c.l.b16 %v76
    %v119 = vunpack.c.l.b16 %v77
    %v120 = vunpack.c.l.b16 %v78
    %v121 = vunpack.c.l.b16 %v79
    %v122 = vunpack.c.l.b16 %v80
    %v123 = vunpack.c.l.b16 %v81
    %v124 = vunpack.c.l.b16 %v82
    %v125 = vunpack.c.l.b16 %v83
    %v126 = vunpack.c.l.b16 %v84
    %v127 = vunpack.c.l.b16 %v85
    %v128 = vunpack.c.l.b16 %v86
    %v129 = vunpack.c.l.b16 %v87
    %v130 = vpack.c.b16 %v115, %v114
    %v131 = vpack.c.b16 %v117, %v116
    %v132 = vpack.c.b16 %v119, %v118
    %v133 = vpack.c.b16 %v121, %v120
    %v134 = vpack.c.b16 %v123, %v122
    %v135 = vpack.c.b16 %v125, %v124
    %v136 = vpack.c.b16 %v127, %v126
    %v137 = vpack.c.b16 %v129, %v128
    %146 = vmatpush.bf16.msra.mxu0 %v137
    %147 = vmatpush.bf16.msra.mxu0 %v136
    %148 = vmatpush.bf16.msra.mxu0 %v135
    %149 = vmatpush.bf16.msra.mxu0 %v134
    %150 = vmatpush.bf16.msra.mxu0 %v133
    %151 = vmatpush.bf16.msra.mxu0 %v132
    %152 = vmatpush.bf16.msra.mxu0 %v131
    %153 = vmatpush.bf16.msra.mxu0 %v130
    %154 = vmatmul.bf16.gmra.mxu0 %v96
    %v155 = vpop.f32.mrf.mxu0
    %v156 = vadd.f32 %v90, %v155
    %v157 = vpop.f32.mrf.mxu0
    %v158 = vadd.f32 %v90, %v157
    %159 = vdwg.mxu0
    %v160 = vmul.f32 %v156, 0.5
    %v161 = vmul.f32 %v158, 0.5
    %v162 = vmul.f32 %v156, 0.044715
    %v163 = vmul.f32 %v158, 0.044715
    %v164 = vmul.f32 %v162, %v156
    %v165 = vmul.f32 %v163, %v158
    %v166 = vmul.f32 %v164, %v156
    %v167 = vmul.f32 %v165, %v158
    %v168 = vadd.f32 %v156, %v166
    %v169 = vadd.f32 %v158, %v167
    %v170 = vmul.f32 %v168, 0.7978846
    %v171 = vmul.f32 %v169, 0.7978846
    %v172 = vtanh.pop %v170
    %v173 = vtanh.pop %v171
    %v174 = vadd.f32 %v172, 1.0
    %v175 = vadd.f32 %v173, 1.0
    %v176 = vmul.f32 %v160, %v174
    %v177 = vmul.f32 %v161, %v175
    %v178 = vld [vmem:[#allocation2] sm:$0xff]
    %v179 = vld [vmem:[#allocation2 + $0x8] sm:$0xff]
    %v180 = vpack.c.bf16 %v177, %v176
    %v181 = vld [vmem:[#allocation8] sm:$0xf]
    %v182 = vld [vmem:[#allocation8 + $0x4] sm:$0xf]
    %v183 = vld [vmem:[#allocation8 + $0x8] sm:$0xf]
    %v184 = vld [vmem:[#allocation8 + $0xc] sm:$0xf]
    %v185 = vld [vmem:[#allocation8 + $0x10] sm:$0xf]
    %v186 = vld [vmem:[#allocation8 + $0x14] sm:$0xf]
    %v187 = vld [vmem:[#allocation8 + $0x18] sm:$0xf]
    %v188 = vld [vmem:[#allocation8 + $0x1c] sm:$0xf]
    %v189 = vld [vmem:[#allocation8 + $0x20] sm:$0xf]
    %v190 = vld [vmem:[#allocation8 + $0x24] sm:$0xf]
    %v191 = vld [vmem:[#allocation8 + $0x28] sm:$0xf]
    %v192 = vld [vmem:[#allocation8 + $0x2c] sm:$0xf]
    %v193 = vld [vmem:[#allocation8 + $0x30] sm:$0xf]
    %v194 = vld [vmem:[#allocation8 + $0x34] sm:$0xf]
    %v195 = vld [vmem:[#allocation8 + $0x38] sm:$0xf]
    %v196 = vld [vmem:[#allocation8 + $0x3c] sm:$0xf]
    %v213 = vunpack.c.l.b16 %v181
    %v214 = vunpack.c.l.b16 %v182
    %v215 = vunpack.c.l.b16 %v183
    %v216 = vunpack.c.l.b16 %v184
    %v217 = vunpack.c.l.b16 %v185
    %v218 = vunpack.c.l.b16 %v186
    %v219 = vunpack.c.l.b16 %v187
    %v220 = vunpack.c.l.b16 %v188
    %v221 = vunpack.c.l.b16 %v189
    %v222 = vunpack.c.l.b16 %v190
    %v223 = vunpack.c.l.b16 %v191
    %v224 = vunpack.c.l.b16 %v192
    %v225 = vunpack.c.l.b16 %v193
    %v226 = vunpack.c.l.b16 %v194
    %v227 = vunpack.c.l.b16 %v195
    %v228 = vunpack.c.l.b16 %v196
    %v229 = vpack.c.b16 %v214, %v213
    %v230 = vpack.c.b16 %v216, %v215
    %v231 = vpack.c.b16 %v218, %v217
    %v232 = vpack.c.b16 %v220, %v219
    %v233 = vpack.c.b16 %v222, %v221
    %v234 = vpack.c.b16 %v224, %v223
    %v235 = vpack.c.b16 %v226, %v225
    %v236 = vpack.c.b16 %v228, %v227
    %245 = vmatpush.bf16.msra.mxu0 %v236
    %246 = vmatpush.bf16.msra.mxu0 %v235
    %247 = vmatpush.bf16.msra.mxu0 %v234
    %248 = vmatpush.bf16.msra.mxu0 %v233
    %249 = vmatpush.bf16.msra.mxu0 %v232
    %250 = vmatpush.bf16.msra.mxu0 %v231
    %251 = vmatpush.bf16.msra.mxu0 %v230
    %252 = vmatpush.bf16.msra.mxu0 %v229
    %253 = vmatmul.bf16.gmra.mxu0 %v180
    %v254 = vpop.f32.mrf.mxu0
    %v255 = vadd.f32 0.0, %v254
    %v256 = vpop.f32.mrf.mxu0
    %v257 = vadd.f32 0.0, %v256
    %258 = vdwg.mxu0
    %v259 = vadd.f32 %v178, %v255
    %v260 = vadd.f32 %v179, %v257
    %261 = vst [vmem:[#allocation2] sm:$0xff] %v259
    %262 = vst [vmem:[#allocation2 + $0x8] sm:$0xff] %v260
    %v263 = vld [vmem:[#allocation2] sm:$0xff]
    %v264 = vld [vmem:[#allocation2 + $0x8] sm:$0xff]
    %v265 = vld [vmem:[%s4] sm:$0x1]
    %v267 = vperm.slane %v265, 0
    %v269 = vadd.f32 %v263, %v267
    %v270 = vadd.f32 %v264, %v267
    %271 = vst [vmem:[#allocation9] sm:$0xff] %v269
    %272 = vst [vmem:[#allocation9 + $0x8] sm:$0xff] %v270
    // Predicated region
    $region34: #{tpu_custom_call.1} parent=1 // pred_check
      _
    $region35: #{tpu_custom_call.1} parent=1 // pred_check_branch
      %274 = sbr.rel (0) target = $region37
    $region36: #{tpu_custom_call.1} parent=1 // pred_region
      %276 = vsyncadd [#allocation5], 0
      %s277 = sshll.u32 [#allocation9], 4
      %s278 = int_to_ptr.vmem [resolvable:$true] %s277
      %s279 = sshll.u32 %s5, 4
      %s280 = int_to_ptr.hbm [resolvable:$true] %s279
      %285 = dma.vmem_to_hbm [thread:$0]  %s278, 256, %s280, [#allocation5], 128, 128, 8
    $region37: #{tpu_custom_call.1} parent=1 // pred_fallthru
      _
    // Predicated region
    $region38: #{tpu_custom_call.1} parent=1 // pred_check
      _
    $region39: #{tpu_custom_call.1} parent=1 // pred_check_branch
      %287 = sbr.rel (0) target = $region41
    $region40: #{tpu_custom_call.1} parent=1 // pred_region
      %289 = dma.done [#allocation5], 256
    $region41: #{tpu_custom_call.1} parent=1 // pred_fallthru
      _
    %290 = vsyncpa [#allocation4], 1
    %291 = vsyncpa [#allocation7], 1
    %292 = vsyncpa [#allocation5], 1

</llo_original>
